<compile_context>
chip_gen: v5e
topology: v5e:2x2
jax: 0.10.0
libtpu: 0.0.40
codegen_flags: <defaults>
</compile_context>

<pallas_src>
import jax
import jax.numpy as jnp
from jax.experimental import pallas as pl
from jax.experimental.pallas import tpu as pltpu


def _copy_kernel(x_ref, o_ref):
    # Lane-dense (block_rows, cols) tiles: straight VMEM copy, unmasked vst.
    o_ref[...] = x_ref[...]


def _sublane_tile(dtype) -> int:
    # Native sublane packing: f32 -> 8, bf16 -> 16, int8/fp8 -> 32.
    itemsize = jnp.dtype(dtype).itemsize
    return max(8, 32 // max(1, itemsize))


def nn_squeeze(x: jax.Array, materialize: bool = False) -> jax.Array:
    """Pallas equivalent of torch.squeeze(x): drop every size-1 dimension.

    Default path is a zero-copy metadata reshape (fastest on every TPU
    generation). Set materialize=True to force a fresh buffer via a tiled,
    double-buffered Pallas copy.
    """
    in_shape = x.shape
    out_shape = tuple(d for d in in_shape if d != 1)
    total = int(x.size)
    itemsize = jnp.dtype(x.dtype).itemsize

    # Fast path: pure metadata reshape — no HBM traffic, no kernel launch.
    # Also used for degenerate / non-lane-tileable cases.
    if (not materialize) or len(out_shape) < 2 or total == 0 or total % 128 != 0:
        return jnp.reshape(x, out_shape)

    # --- opt-in materializing copy: flatten to lane-dense (rows, cols) ---
    cols = 128
    for c in (32768, 16384, 8192, 4096, 2048, 1024, 512, 256, 128):
        if total % c == 0:
            cols = c
            break
    rows = total // cols
    x2 = jnp.reshape(x, (rows, cols))

    sub = _sublane_tile(x.dtype)

    # Byte-capped row tiling only (no fixed row cap). ~4 MiB blocks:
    # 4 live buffers (double-buffered in+out) = 16 MiB, fits all generations
    # once the scoped VMEM limit is raised to 32 MiB.
    max_block_bytes = 4 * 1024 * 1024
    rows_by_vmem = max(sub, (max_block_bytes // (cols * itemsize)) // sub * sub)
    block_rows = min(rows, rows_by_vmem)
    if block_rows != rows:
        # (8,128) rule with dtype-native sublane tile.
        block_rows = max(sub, (block_rows // sub) * sub)
    elif rows >= 2 * sub:
        # Whole tensor would be a single tile: split into >=2 grid steps so
        # the "parallel" axis gives v7x's second TensorCore work.
        half = pl.cdiv(rows, 2)
        block_rows = min(rows, pl.cdiv(half, sub) * sub)

    grid = (pl.cdiv(rows, block_rows),)

    y2 = pl.pallas_call(
        _copy_kernel,
        out_shape=jax.ShapeDtypeStruct((rows, cols), x.dtype),
        grid=grid,
        in_specs=[pl.BlockSpec((block_rows, cols), lambda i: (i, 0))],
        out_specs=pl.BlockSpec((block_rows, cols), lambda i: (i, 0)),
        compiler_params=pltpu.CompilerParams(
            dimension_semantics=("parallel",),  # shard row tiles on v7x 2x TC
            vmem_limit_bytes=32 << 20,
        ),
        cost_estimate=pl.CostEstimate(
            flops=0,
            transcendentals=0,
            bytes_accessed=2 * total * itemsize,
        ),
    )(x2)

    return jnp.reshape(y2, out_shape)


if __name__ == "__main__":
    key = jax.random.PRNGKey(0)
    k0, k1 = jax.random.split(key)

    # NCHW-style input with a singleton dim: (2, 1, 4, 16, 16) -> (2, 4, 16, 16)
    x = jax.random.normal(k0, (2, 1, 4, 16, 16), dtype=jnp.float32)
    y_ref = jnp.squeeze(x)

    # Default path: zero-copy metadata reshape (fastest on all generations).
    y = jax.block_until_ready(nn_squeeze(x))
    assert y.shape == y_ref.shape == (2, 4, 16, 16), y.shape
    assert y.dtype == x.dtype
    assert bool(jnp.all(y == y_ref))

    # Exercise the Pallas copy kernel once (opt-in materializing path).
    y_mat = jax.block_until_ready(nn_squeeze(x, materialize=True))
    assert y_mat.shape == (2, 4, 16, 16)
    assert y_mat.dtype == x.dtype
    assert bool(jnp.all(y_mat == y_ref))

    # Multi-tile materialized copy with a partial last tile (17 rows -> grid=2).
    w = jax.random.normal(k1, (17, 1, 128), dtype=jnp.float32)
    w_out = jax.block_until_ready(nn_squeeze(w, materialize=True))
    assert w_out.shape == (17, 128)
    assert bool(jnp.all(w_out == jnp.squeeze(w)))

    # Degenerate case handled by the zero-copy reshape path.
    z = jax.block_until_ready(nn_squeeze(jnp.ones((1, 1, 7), dtype=jnp.float32)))
    assert z.shape == (7,)

    print("KERNEL_OK")
</pallas_src>

<mosaic_0001>
module attributes {stable_mosaic.version = 11 : i64} {
  func.func @_copy_kernel(%arg0: i32, %arg1: memref<1x2048xf32, #tpu.memory_space<vmem>>, %arg2: memref<1x2048xf32, #tpu.memory_space<vmem>>) attributes {dimension_semantics = [#tpu.dimension_semantics<parallel>], iteration_bounds = array<i64: 1>, scalar_prefetch = 0 : i64, scratch_operands = 0 : i64, tpu.core_type = #tpu.core_type<tc>, window_params = [{transform_indices = @transform_0, window_bounds = array<i64: 1, 2048>}, {transform_indices = @transform_1, window_bounds = array<i64: 1, 2048>}]} {
    %c0 = arith.constant 0 : index
    %c0_0 = arith.constant 0 : index
    %0 = vector.load %arg1[%c0, %c0_0] : memref<1x2048xf32, #tpu.memory_space<vmem>>, vector<1x2048xf32>
    %c0_1 = arith.constant 0 : index
    %c0_2 = arith.constant 0 : index
    %1 = vector.load %arg2[%c0_1, %c0_2] : memref<1x2048xf32, #tpu.memory_space<vmem>>, vector<1x2048xf32>
    tpu.vector_store %arg2[%c0_1, %c0_2], %0 {strides = array<i32>} : memref<1x2048xf32, #tpu.memory_space<vmem>>, vector<1x2048xf32>,
    return
  }
  func.func @transform_0(%arg0: i32) -> (i32, i32) {
    %c0_i32 = arith.constant 0 : i32
    %c0_i32_0 = arith.constant 0 : i32
    return %arg0, %c0_i32 : i32, i32
  }
  func.func @transform_1(%arg0: i32) -> (i32, i32) {
    %c0_i32 = arith.constant 0 : i32
    %c0_i32_0 = arith.constant 0 : i32
    return %arg0, %c0_i32 : i32, i32
  }
}

</mosaic_0001>

<llo_original>
// kernel: tpu_custom_call.1
$region0: #{tpu_custom_call.1}
  #allocation0 [shape = 'u32[]', space=smem, size = 0x4, offset = 0x4, fixed_abs, tag = 'smem constant byte address 0x4 - core index']
  #allocation1 [shape = 'u32[72,128]{1,0:T(1,128)}', space=vmem, size = 0x9000, scoped, tag = 'internal scratch']
  %s0 = inlined_call_operand.hbm [shape: f32[1,2048], index: 0, kind: input, shape index: {}]
  %s1 = inlined_call_operand.hbm [shape: f32[1,2048], index: 1, kind: output, shape index: {}]
  %s2 = sld [smem:[#allocation0]]
  $region18: #{tpu_custom_call.1} parent=0
    _
  %s4 = ssub.s32 1, %s2
  %s5 = scalar_select 0, %s4, %s2
  $region1: #{tpu_custom_call.1} parent=0
    #allocation2 [shape = 'u8[8192]{0}', space=vmem, size = 0x2000, scoped, tag = 'input window, operand 0, single buffered']
    #allocation3 [shape = 's32[1]{0}', space=sflag, size = 0x4, scoped, tag = 'scoped memory for tpu_custom_call.1']
    #allocation4 [shape = 's32[1]{0}', space=sflag, size = 0x4, scoped, tag = 'scoped memory for tpu_custom_call.1']
    #allocation5 [shape = 'u8[8192]{0}', space=vmem, size = 0x2000, scoped, tag = 'output window, operand 0, single buffered']
    %6 = vsyncpa [#allocation3], 0
    %7 = vsyncpa [#allocation4], 0
    // Predicated region
    $region2: #{tpu_custom_call.1} parent=1 // pred_check
      _
    $region3: #{tpu_custom_call.1} parent=1 // pred_check_branch
      %9 = sbr.rel (0) target = $region5
    $region4: #{tpu_custom_call.1} parent=1 // pred_region
      %11 = vsyncadd [#allocation3], 0
      %s13 = sshll.u32 %s0, 4
      %s14 = int_to_ptr.hbm [resolvable:$true] %s13
      %s15 = sshll.u32 [#allocation2], 4
      %s16 = int_to_ptr.vmem [resolvable:$true] %s15
      %18 = dma.hbm_to_vmem [thread:$0]  %s14, 256, %s16, [#allocation3]
    $region5: #{tpu_custom_call.1} parent=1 // pred_fallthru
      _
    // Predicated region
    $region6: #{tpu_custom_call.1} parent=1 // pred_check
      _
    $region7: #{tpu_custom_call.1} parent=1 // pred_check_branch
      %20 = sbr.rel (0) target = $region9
    $region8: #{tpu_custom_call.1} parent=1 // pred_region
      %22 = dma.done [#allocation3], 256
    $region9: #{tpu_custom_call.1} parent=1 // pred_fallthru
      _
    %v23 = vld [vmem:[#allocation2] sm:$0xff]
    %v24 = vld [vmem:[#allocation2 + $0x8] sm:$0xff]
    %25 = vst [vmem:[#allocation5] sm:$0xff] %v23
    %26 = vst [vmem:[#allocation5 + $0x8] sm:$0xff] %v24
    // Predicated region
    $region10: #{tpu_custom_call.1} parent=1 // pred_check
      _
    $region11: #{tpu_custom_call.1} parent=1 // pred_check_branch
      %28 = sbr.rel (0) target = $region13
    $region12: #{tpu_custom_call.1} parent=1 // pred_region
      %30 = vsyncadd [#allocation4], 0
      %s32 = sshll.u32 [#allocation5], 4
      %s33 = int_to_ptr.vmem [resolvable:$true] %s32
      %s34 = sshll.u32 %s1, 4
      %s35 = int_to_ptr.hbm [resolvable:$true] %s34
      %37 = dma.vmem_to_hbm [thread:$0]  %s33, 256, %s35, [#allocation4]
    $region13: #{tpu_custom_call.1} parent=1 // pred_fallthru
      _
    // Predicated region
    $region14: #{tpu_custom_call.1} parent=1 // pred_check
      _
    $region15: #{tpu_custom_call.1} parent=1 // pred_check_branch
      %39 = sbr.rel (0) target = $region17
    $region16: #{tpu_custom_call.1} parent=1 // pred_region
      %41 = dma.done [#allocation4], 256
    $region17: #{tpu_custom_call.1} parent=1 // pred_fallthru
      _
    %42 = vsyncpa [#allocation3], 1
    %43 = vsyncpa [#allocation4], 1

</llo_original>
